<compile_context>
chip_gen: v6e
topology: v6e:2x2x1
jax: 0.10.0
libtpu: 0.0.40
codegen_flags: <defaults>
</compile_context>

<pallas_src>
from functools import partial

import jax
import jax.numpy as jnp
from jax import lax
from jax.experimental import pallas as pl
from jax.experimental.pallas import tpu as pltpu


def _elu_plus_one(x):
    # F.elu(x) + 1  ==  x + 1 (x > 0)  else  exp(x)     (computed in f32)
    return jnp.where(x > 0, x + 1.0, jnp.exp(x))


def linear_attention_kernel(q_ref, k_ref, v_ref, qm_ref, km_ref, bd_ref,
                            o_ref, kv_ref, ksum_ref, *,
                            eps, mm_dtype, approx_recip):
    # ---- K-side phase: once per batch slice (l == 0); results persist in VMEM
    # scratch across the (arbitrary) l axis.
    @pl.when(pl.program_id(1) == 0)
    def _():
        k = k_ref[0]                                          # (S, H*D)  native
        v = v_ref[0]                                          # (S, H*Dv) native
        km = km_ref[0]                                        # (S, 1)    f32
        kf = _elu_plus_one(k.astype(jnp.float32)) * km        # (S, H*D)  f32
        vn = v.astype(jnp.float32) * km                       # (S, H*Dv) f32
        ksum_ref[...] = jnp.sum(kf, axis=0, keepdims=True)    # (1, H*D)
        # Full-width contraction over S (no materialized Kf.T), then zero the
        # cross-head blocks with the 0/1 block-diagonal head mask.
        kv_full = lax.dot_general(
            kf.astype(mm_dtype), vn.astype(mm_dtype),
            dimension_numbers=(((0,), (0,)), ((), ())),
            preferred_element_type=jnp.float32)                # (H*D, H*Dv)
        kv_ref[...] = (kv_full * bd_ref[...].astype(jnp.float32)).astype(mm_dtype)

    # ---- Q-side phase: every L tile, lane-dense over the whole head slab.
    q = q_ref[0]                                               # (Lt, H*D)
    qm = qm_ref[0]                                             # (Lt, 1)  f32
    qf = _elu_plus_one(q.astype(jnp.float32)) * qm             # (Lt, H*D) f32
    qf_mm = qf.astype(mm_dtype)

    # Un-normalized output: one full-width (Lt,HD)x(HD,HDv) MXU matmul.
    o_pre = jnp.dot(qf_mm, kv_ref[...], preferred_element_type=jnp.float32)

    # Normalizer: Zden[l, j in head h] = sum_d Qf_h[l,d] * ksum_h[d], broadcast
    # across each head's Dv output columns via the block-diagonal 0/1 mask
    # (second full-width matmul; no sub-128-lane segment reductions).
    qk_mm = (qf * ksum_ref[...]).astype(mm_dtype)              # (Lt, H*D)
    zden = jnp.dot(qk_mm, bd_ref[...],
                   preferred_element_type=jnp.float32) + eps   # (Lt, H*Dv)

    if approx_recip:
        out = o_pre * pl.reciprocal(zden, approx=True)         # EUP vrcp slot
    else:
        out = o_pre / zden                                     # exact f32 path

    # Single lane-dense (Lt, H*Dv) store.
    o_ref[0, :, :] = out.astype(o_ref.dtype)


def linear_attention(queries, keys, values, q_mask=None, kv_mask=None,
                     eps=1e-6, l_tile=1024):
    """queries: [N, L, H, D], keys/values: [N, S, H, Dv], masks: [N, L]/[N, S].

    Returns [N, L, H, Dv] in the input dtype.
    """
    N, L, H, D = queries.shape
    _, S, _, Dv = values.shape
    HD, HDv = H * D, H * Dv
    out_dtype = queries.dtype

    # Layout-preserving reshapes (contiguous last dims) -> no HBM transpose.
    q = queries.reshape(N, L, HD)
    k = keys.reshape(N, S, HD)
    v = values.reshape(N, S, HDv)

    qm = (jnp.ones((N, L, 1), jnp.float32) if q_mask is None
          else q_mask.astype(jnp.float32).reshape(N, L, 1))
    km = (jnp.ones((N, S, 1), jnp.float32) if kv_mask is None
          else kv_mask.astype(jnp.float32).reshape(N, S, 1))

    mm_dtype = jnp.bfloat16 if queries.dtype == jnp.bfloat16 else jnp.float32
    approx_recip = mm_dtype == jnp.bfloat16

    # 0/1 block-diagonal head mask (H*D x H*Dv), shared by KV masking and Zden.
    row_h = jnp.arange(HD, dtype=jnp.int32) // D
    col_h = jnp.arange(HDv, dtype=jnp.int32) // Dv
    bd = (row_h[:, None] == col_h[None, :]).astype(mm_dtype)

    lt = min(L, l_tile)                 # large L tile; K/V dominate VMEM anyway
    num_l = pl.cdiv(L, lt)

    in_b = queries.dtype.itemsize
    mm_b = jnp.dtype(mm_dtype).itemsize
    block_bytes = (2 * lt * (HD + HDv) * in_b + 2 * lt * 4      # q, out, qm (x2 buf)
                   + 2 * S * (HD + HDv) * in_b + 2 * S * 4      # k, v, km (x2 buf)
                   + 2 * HD * HDv * mm_b                        # bd
                   + HD * HDv * mm_b + HD * 4)                  # scratch kv, ksum
    interm_bytes = (S * (HD + HDv) * 4 + HD * HDv * 4           # kf, vn, kv_full
                    + lt * (2 * HD + 3 * HDv) * 4)              # qf, qk, o_pre, zden, out
    vmem_limit = min(max(int(1.5 * (block_bytes + interm_bytes)), 32 << 20),
                     64 << 20)

    nbytes = lambda a: a.size * a.dtype.itemsize
    cost = pl.CostEstimate(
        flops=2 * N * HD * HDv * (S + 2 * L),
        transcendentals=N * HD * (L + S),
        bytes_accessed=(nbytes(q) + nbytes(k) + nbytes(v) + nbytes(qm)
                        + nbytes(km) + nbytes(bd) + N * L * HDv * in_b),
    )

    out = pl.pallas_call(
        partial(linear_attention_kernel, eps=eps, mm_dtype=mm_dtype,
                approx_recip=approx_recip),
        out_shape=jax.ShapeDtypeStruct((N, L, HDv), out_dtype),
        grid_spec=pltpu.PrefetchScalarGridSpec(
            num_scalar_prefetch=0,
            grid=(N, num_l),
            in_specs=[
                pl.BlockSpec((1, lt, HD), lambda n, l: (n, l, 0)),   # Q tile
                pl.BlockSpec((1, S, HD), lambda n, l: (n, 0, 0)),    # K (resident)
                pl.BlockSpec((1, S, HDv), lambda n, l: (n, 0, 0)),   # V (resident)
                pl.BlockSpec((1, lt, 1), lambda n, l: (n, l, 0)),    # q mask tile
                pl.BlockSpec((1, S, 1), lambda n, l: (n, 0, 0)),     # kv mask
                pl.BlockSpec((HD, HDv), lambda n, l: (0, 0)),        # block-diag mask
            ],
            out_specs=pl.BlockSpec((1, lt, HDv), lambda n, l: (n, l, 0)),
            scratch_shapes=[pltpu.VMEM((HD, HDv), mm_dtype),         # KV (block-diag)
                            pltpu.VMEM((1, HD), jnp.float32)],        # ksum
        ),
        compiler_params=pltpu.CompilerParams(
            dimension_semantics=("parallel", "arbitrary"),
            vmem_limit_bytes=vmem_limit),
        cost_estimate=cost,
    )(q, k, v, qm, km, bd)

    return out.reshape(N, L, H, Dv)


def linear_attention_reference(queries, keys, values, q_mask=None, kv_mask=None,
                               eps=1e-6):
    """Pure-JAX (f32) transcription of the PyTorch forward, for verification."""
    queries = queries.astype(jnp.float32)
    keys = keys.astype(jnp.float32)
    values = values.astype(jnp.float32)
    Q = jax.nn.elu(queries) + 1
    K = jax.nn.elu(keys) + 1
    if q_mask is not None:
        Q = Q * q_mask[:, :, None, None].astype(jnp.float32)
    if kv_mask is not None:
        K = K * kv_mask[:, :, None, None].astype(jnp.float32)
        values = values * kv_mask[:, :, None, None].astype(jnp.float32)
    v_length = values.shape[1]
    values = values / v_length
    KV = jnp.einsum('nshd,nshv->nhdv', K, values)
    Z = 1.0 / (jnp.einsum('nlhd,nhd->nlh', Q, K.sum(axis=1)) + eps)
    return jnp.einsum('nlhd,nhdv,nlh->nlhv', Q, KV, Z) * v_length


if __name__ == "__main__":
    # LinearAttention has no learned parameters (eps only).
    N, L, S, H, D = 2, 16, 8, 4, 32       # H*D = 128 -> lane-dense slabs

    key = jax.random.PRNGKey(0)
    kq, kk, kv, kmq, kmk = jax.random.split(key, 5)
    queries = jax.random.normal(kq, (N, L, H, D), dtype=jnp.float32)
    keys = jax.random.normal(kk, (N, S, H, D), dtype=jnp.float32)
    values = jax.random.normal(kv, (N, S, H, D), dtype=jnp.float32)
    q_mask = (jax.random.uniform(kmq, (N, L)) > 0.2).astype(jnp.float32)
    kv_mask = (jax.random.uniform(kmk, (N, S)) > 0.2).astype(jnp.float32)

    # float32 path (exact reciprocal).
    out = jax.block_until_ready(
        linear_attention(queries, keys, values, q_mask, kv_mask))
    ref = linear_attention_reference(queries, keys, values, q_mask, kv_mask)
    assert out.shape == (N, L, H, D), out.shape
    assert out.dtype == queries.dtype, out.dtype
    assert jnp.allclose(out, ref, rtol=2e-3, atol=2e-3), \
        f"f32 max abs err = {jnp.max(jnp.abs(out - ref))}"

    # bf16 path: native-dtype DMA + bf16 MXU with f32 accumulation.
    q16, k16, v16 = (x.astype(jnp.bfloat16) for x in (queries, keys, values))
    out16 = jax.block_until_ready(
        linear_attention(q16, k16, v16, q_mask, kv_mask))
    assert out16.dtype == jnp.bfloat16, out16.dtype
    ref16 = linear_attention_reference(q16, k16, v16, q_mask, kv_mask)
    assert jnp.allclose(out16.astype(jnp.float32), ref16, rtol=5e-2, atol=5e-2), \
        f"bf16 max abs err = {jnp.max(jnp.abs(out16.astype(jnp.float32) - ref16))}"

    print("KERNEL_OK")
</pallas_src>

<mosaic_0001>
module attributes {stable_mosaic.version = 11 : i64} {
  func.func @linear_attention_kernel(%arg0: i32, %arg1: i32, %arg2: memref<1x16x128xf32, #tpu.memory_space<vmem>>, %arg3: memref<1x8x128xf32, #tpu.memory_space<vmem>>, %arg4: memref<1x8x128xf32, #tpu.memory_space<vmem>>, %arg5: memref<1x16x1xf32, #tpu.memory_space<vmem>>, %arg6: memref<1x8x1xf32, #tpu.memory_space<vmem>>, %arg7: memref<128x128xf32, #tpu.memory_space<vmem>>, %arg8: memref<1x16x128xf32, #tpu.memory_space<vmem>>, %arg9: memref<128x128xf32, #tpu.memory_space<vmem>>, %arg10: memref<1x128xf32, #tpu.memory_space<vmem>>) attributes {dimension_semantics = [#tpu.dimension_semantics<parallel>, #tpu.dimension_semantics<arbitrary>], iteration_bounds = array<i64: 2, 1>, scalar_prefetch = 0 : i64, scratch_operands = 2 : i64, tpu.core_type = #tpu.core_type<tc>, window_params = [{transform_indices = @transform_0, window_bounds = array<i64: 1, 16, 128>}, {transform_indices = @transform_1, window_bounds = array<i64: 1, 8, 128>}, {transform_indices = @transform_2, window_bounds = array<i64: 1, 8, 128>}, {transform_indices = @transform_3, window_bounds = array<i64: 1, 16, 1>}, {transform_indices = @transform_4, window_bounds = array<i64: 1, 8, 1>}, {pipeline_mode = #tpu.pipeline_mode<synchronous>, transform_indices = @transform_5, window_bounds = array<i64: 128, 128>}, {transform_indices = @transform_6, window_bounds = array<i64: 1, 16, 128>}]} {
    %c0_i32 = arith.constant 0 : i32
    %0 = arith.cmpi eq, %arg1, %c0_i32 : i32
    %1 = arith.extui %0 : i1 to i32
    %c0_i32_0 = arith.constant 0 : i32
    %2 = arith.cmpi ne, %1, %c0_i32_0 : i32
    scf.if %2 {
      %c0_19 = arith.constant 0 : index
      %c0_20 = arith.constant 0 : index
      %c0_21 = arith.constant 0 : index
      %28 = vector.load %arg3[%c0_19, %c0_20, %c0_21] : memref<1x8x128xf32, #tpu.memory_space<vmem>>, vector<1x8x128xf32>
      %29 = vector.shape_cast %28 : vector<1x8x128xf32> to vector<8x128xf32>
      %c0_22 = arith.constant 0 : index
      %c0_23 = arith.constant 0 : index
      %c0_24 = arith.constant 0 : index
      %30 = vector.load %arg4[%c0_22, %c0_23, %c0_24] : memref<1x8x128xf32, #tpu.memory_space<vmem>>, vector<1x8x128xf32>
      %31 = vector.shape_cast %30 : vector<1x8x128xf32> to vector<8x128xf32>
      %c0_25 = arith.constant 0 : index
      %c0_26 = arith.constant 0 : index
      %c0_27 = arith.constant 0 : index
      %32 = vector.load %arg6[%c0_25, %c0_26, %c0_27] : memref<1x8x1xf32, #tpu.memory_space<vmem>>, vector<1x8x1xf32>
      %33 = vector.shape_cast %32 : vector<1x8x1xf32> to vector<8x1xf32>
      %cst_28 = arith.constant 0.000000e+00 : f32
      %34 = vector.broadcast %cst_28 : f32 to vector<8x128xf32>
      %35 = arith.cmpf ogt, %29, %34 : vector<8x128xf32>
      %cst_29 = arith.constant 1.000000e+00 : f32
      %36 = vector.broadcast %cst_29 : f32 to vector<8x128xf32>
      %37 = arith.addf %29, %36 : vector<8x128xf32>
      %38 = math.exp %29 : vector<8x128xf32>
      %39 = arith.select %35, %37, %38 : vector<8x128xi1>, vector<8x128xf32>
      %40 = vector.broadcast %33 : vector<8x1xf32> to vector<8x128xf32>
      %41 = arith.mulf %39, %40 : vector<8x128xf32>
      %42 = vector.broadcast %33 : vector<8x1xf32> to vector<8x128xf32>
      %43 = arith.mulf %31, %42 : vector<8x128xf32>
      %cst_30 = arith.constant dense<0.000000e+00> : vector<128xf32>
      %44 = vector.multi_reduction <add>, %41, %cst_30 [0] : vector<8x128xf32> to vector<128xf32>
      %45 = vector.shape_cast %44 : vector<128xf32> to vector<1x128xf32>
      %c0_31 = arith.constant 0 : index
      %c0_32 = arith.constant 0 : index
      %46 = vector.load %arg10[%c0_31, %c0_32] : memref<1x128xf32, #tpu.memory_space<vmem>>, vector<1x128xf32>
      tpu.vector_store %arg10[%c0_31, %c0_32], %45 {strides = array<i32>} : memref<1x128xf32, #tpu.memory_space<vmem>>, vector<1x128xf32>,
      %cst_33 = arith.constant dense<0.000000e+00> : vector<128x128xf32>
      %47 = tpu.matmul %41, %43, %cst_33 {dimension_numbers = #tpu.dot_dimension_numbers<[0], [0], [1], [1], [0, 1, 1, 1], [], []>} : vector<8x128xf32>, vector<8x128xf32>, vector<128x128xf32> -> vector<128x128xf32>
      %c0_34 = arith.constant 0 : index
      %c0_35 = arith.constant 0 : index
      %48 = vector.load %arg7[%c0_34, %c0_35] : memref<128x128xf32, #tpu.memory_space<vmem>>, vector<128x128xf32>
      %49 = arith.mulf %47, %48 : vector<128x128xf32>
      %c0_36 = arith.constant 0 : index
      %c0_37 = arith.constant 0 : index
      %50 = vector.load %arg9[%c0_36, %c0_37] : memref<128x128xf32, #tpu.memory_space<vmem>>, vector<128x128xf32>
      tpu.vector_store %arg9[%c0_36, %c0_37], %49 {strides = array<i32>} : memref<128x128xf32, #tpu.memory_space<vmem>>, vector<128x128xf32>,
    } else {
    }
    %c0 = arith.constant 0 : index
    %c0_1 = arith.constant 0 : index
    %c0_2 = arith.constant 0 : index
    %3 = vector.load %arg2[%c0, %c0_1, %c0_2] : memref<1x16x128xf32, #tpu.memory_space<vmem>>, vector<1x16x128xf32>
    %4 = vector.shape_cast %3 : vector<1x16x128xf32> to vector<16x128xf32>
    %c0_3 = arith.constant 0 : index
    %c0_4 = arith.constant 0 : index
    %c0_5 = arith.constant 0 : index
    %5 = vector.load %arg5[%c0_3, %c0_4, %c0_5] : memref<1x16x1xf32, #tpu.memory_space<vmem>>, vector<1x16x1xf32>
    %6 = vector.shape_cast %5 : vector<1x16x1xf32> to vector<16x1xf32>
    %cst = arith.constant 0.000000e+00 : f32
    %7 = vector.broadcast %cst : f32 to vector<16x128xf32>
    %8 = arith.cmpf ogt, %4, %7 : vector<16x128xf32>
    %cst_6 = arith.constant 1.000000e+00 : f32
    %9 = vector.broadcast %cst_6 : f32 to vector<16x128xf32>
    %10 = arith.addf %4, %9 : vector<16x128xf32>
    %11 = math.exp %4 : vector<16x128xf32>
    %12 = arith.select %8, %10, %11 : vector<16x128xi1>, vector<16x128xf32>
    %13 = vector.broadcast %6 : vector<16x1xf32> to vector<16x128xf32>
    %14 = arith.mulf %12, %13 : vector<16x128xf32>
    %c0_7 = arith.constant 0 : index
    %c0_8 = arith.constant 0 : index
    %15 = vector.load %arg9[%c0_7, %c0_8] : memref<128x128xf32, #tpu.memory_space<vmem>>, vector<128x128xf32>
    %cst_9 = arith.constant dense<0.000000e+00> : vector<16x128xf32>
    %16 = tpu.matmul %14, %15, %cst_9 {dimension_numbers = #tpu.dot_dimension_numbers<[1], [0], [0], [1], [0, 0, 1, 1], [], []>} : vector<16x128xf32>, vector<128x128xf32>, vector<16x128xf32> -> vector<16x128xf32>
    %c0_10 = arith.constant 0 : index
    %c0_11 = arith.constant 0 : index
    %17 = vector.load %arg10[%c0_10, %c0_11] : memref<1x128xf32, #tpu.memory_space<vmem>>, vector<1x128xf32>
    %18 = vector.broadcast %17 : vector<1x128xf32> to vector<16x128xf32>
    %19 = arith.mulf %14, %18 : vector<16x128xf32>
    %c0_12 = arith.constant 0 : index
    %c0_13 = arith.constant 0 : index
    %20 = vector.load %arg7[%c0_12, %c0_13] : memref<128x128xf32, #tpu.memory_space<vmem>>, vector<128x128xf32>
    %cst_14 = arith.constant dense<0.000000e+00> : vector<16x128xf32>
    %21 = tpu.matmul %19, %20, %cst_14 {dimension_numbers = #tpu.dot_dimension_numbers<[1], [0], [0], [1], [0, 0, 1, 1], [], []>} : vector<16x128xf32>, vector<128x128xf32>, vector<16x128xf32> -> vector<16x128xf32>
    %cst_15 = arith.constant 9.99999997E-7 : f32
    %22 = vector.broadcast %cst_15 : f32 to vector<16x128xf32>
    %23 = arith.addf %21, %22 : vector<16x128xf32>
    %24 = arith.divf %16, %23 : vector<16x128xf32>
    %c0_16 = arith.constant 0 : index
    %c0_17 = arith.constant 0 : index
    %c0_18 = arith.constant 0 : index
    %25 = vector.load %arg8[%c0_16, %c0_17, %c0_18] : memref<1x16x128xf32, #tpu.memory_space<vmem>>, vector<1x16x128xf32>
    %26 = vector.shape_cast %25 : vector<1x16x128xf32> to vector<16x128xf32>
    %27 = vector.shape_cast %24 : vector<16x128xf32> to vector<1x16x128xf32>
    tpu.vector_store %arg8[%c0_16, %c0_17, %c0_18], %27 {strides = array<i32>} : memref<1x16x128xf32, #tpu.memory_space<vmem>>, vector<1x16x128xf32>,
    return
  }
  func.func @transform_0(%arg0: i32, %arg1: i32) -> (i32, i32, i32) {
    %c0_i32 = arith.constant 0 : i32
    %c0_i32_0 = arith.constant 0 : i32
    return %arg0, %arg1, %c0_i32 : i32, i32, i32
  }
  func.func @transform_1(%arg0: i32, %arg1: i32) -> (i32, i32, i32) {
    %c0_i32 = arith.constant 0 : i32
    %c0_i32_0 = arith.constant 0 : i32
    %c0_i32_1 = arith.constant 0 : i32
    return %arg0, %c0_i32, %c0_i32_0 : i32, i32, i32
  }
  func.func @transform_2(%arg0: i32, %arg1: i32) -> (i32, i32, i32) {
    %c0_i32 = arith.constant 0 : i32
    %c0_i32_0 = arith.constant 0 : i32
    %c0_i32_1 = arith.constant 0 : i32
    return %arg0, %c0_i32, %c0_i32_0 : i32, i32, i32
  }
  func.func @transform_3(%arg0: i32, %arg1: i32) -> (i32, i32, i32) {
    %c0_i32 = arith.constant 0 : i32
    %c0_i32_0 = arith.constant 0 : i32
    return %arg0, %arg1, %c0_i32 : i32, i32, i32
  }
  func.func @transform_4(%arg0: i32, %arg1: i32) -> (i32, i32, i32) {
    %c0_i32 = arith.constant 0 : i32
    %c0_i32_0 = arith.constant 0 : i32
    %c0_i32_1 = arith.constant 0 : i32
    return %arg0, %c0_i32, %c0_i32_0 : i32, i32, i32
  }
  func.func @transform_5(%arg0: i32, %arg1: i32) -> (i32, i32) {
    %c0_i32 = arith.constant 0 : i32
    %c0_i32_0 = arith.constant 0 : i32
    %c0_i32_1 = arith.constant 0 : i32
    return %c0_i32, %c0_i32_0 : i32, i32
  }
  func.func @transform_6(%arg0: i32, %arg1: i32) -> (i32, i32, i32) {
    %c0_i32 = arith.constant 0 : i32
    %c0_i32_0 = arith.constant 0 : i32
    return %arg0, %arg1, %c0_i32 : i32, i32, i32
  }
}

</mosaic_0001>

<llo_original>
// kernel: tpu_custom_call.1
$region0: #{tpu_custom_call.1}
  #allocation0 [shape = 'u32[]', space=smem, size = 0x4, offset = 0x4, fixed_abs, tag = 'smem constant byte address 0x4 - core index']
  #allocation1 [shape = 'u32[144,128]{1,0:T(1,128)}', space=vmem, size = 0x12000, scoped, tag = 'internal scratch']
  #allocation2 [shape = 'f32[128,128]{1,0:T(8,128)}', space=vmem, size = 0x10000, scoped, tag = 'scratch operand']
  #allocation3 [shape = 'f32[1,128]{1,0:T(1,128)}', space=vmem, size = 0x200, scoped, tag = 'scratch operand']
  %s0 = inlined_call_operand.vmem [shape: f32[2,16,128], index: 0, kind: input, shape index: {}]
  %s1 = inlined_call_operand.vmem [shape: f32[2,8,128], index: 1, kind: input, shape index: {}]
  %s2 = inlined_call_operand.hbm [shape: f32[2,8,128], index: 2, kind: input, shape index: {}]
  %s3 = inlined_call_operand.vmem [shape: f32[2,16,1], index: 3, kind: input, shape index: {}]
  %s4 = inlined_call_operand.vmem [shape: f32[2,8,1], index: 4, kind: input, shape index: {}]
  %s5 = inlined_call_operand.hbm [shape: f32[128,128], index: 5, kind: input, shape index: {}]
  %s6 = inlined_call_operand.hbm [shape: f32[2,16,128], index: 6, kind: output, shape index: {}]
  %s7 = sld [smem:[#allocation0]]
  $region69: #{tpu_custom_call.1} parent=0
    _
  %s9 = ssub.s32 1, %s7
  %s10 = scalar_select 0, %s9, %s7
  $region1: #{tpu_custom_call.1} parent=0
    #allocation4 [shape = 'u8[8192]{0}', space=vmem, size = 0x2000, scoped, tag = 'input window, operand 2']
    #allocation5 [shape = 's32[2]{0}', space=sflag, size = 0x8, scoped, tag = 'scoped memory for tpu_custom_call.1']
    #allocation6 [shape = 's32[2]{0}', space=sflag, size = 0x8, scoped, tag = 'scoped memory for tpu_custom_call.1']
    #allocation7 [shape = 'u8[65536]{0}', space=vmem, size = 0x10000, scoped, tag = 'input window, operand 5, single buffered']
    #allocation8 [shape = 's32[1]{0}', space=sflag, size = 0x4, scoped, tag = 'scoped memory for tpu_custom_call.1']
    #allocation9 [shape = 'u8[16384]{0}', space=vmem, size = 0x4000, scoped, tag = 'output window, operand 0']
    %11 = vsyncpa [#allocation5], 0
    %s12 = scalar_lea.sflag [#allocation5], 1
    %13 = vsyncpa %s12, 0
    %14 = vsyncpa [#allocation8], 0
    %15 = vsyncpa [#allocation6], 0
    %s16 = scalar_lea.sflag [#allocation6], 1
    %17 = vsyncpa %s16, 0
    loop: start=0, step=1, limit=4
    $region2: #{tpu_custom_call.1} parent=1 // loop_pre_header
      _
    $region3: #{tpu_custom_call.1} parent=1 // loop_header
      %s19 = sphi 0, %s23
      %p20 = scmp.ge.s32.totalorder %s19, 4
      %s26 = sphi 0, %s38
      %s27 = sphi 0, %s34
      %s28 = sphi 0, %s26
      %s29 = sphi 0, %s27
      %s30 = sphi 0, %s28
      %s31 = sphi 0, %s29
      %s43 = sphi 0, %s45
      %s46 = sphi 0, %s43
      %s47 = sphi 0, %s46
      %s63 = sphi 0, %s47
      %s69 = sphi 0, %s71
      %s72 = sphi 0, %s69
      %s73 = sphi 0, %s72
      %s89 = sphi 0, %s73
      %s95 = sphi 0, %s97
      %s98 = sphi 0, %s95
      %s99 = sphi 0, %s98
      %s115 = sphi 0, %s99
      %s123 = sphi 0, %s125
      %s126 = sphi 0, %s123
      %s127 = sphi 0, %s126
      %s143 = sphi 0, %s127
      %s149 = sphi 0, %s151
      %s152 = sphi 0, %s149
      %s153 = sphi 0, %s152
      %s169 = sphi 0, %s153
      %s173 = sphi 0, %s173
      %s175 = sphi 0, %s173
      %s176 = sphi 0, %s175
      %s190 = sphi 0, %s176
      %s198 = sphi 0, %s200
      %s201 = sphi 0, %s198
      %s202 = sphi 0, %s201
      %s218 = sphi 0, %s202
    $region4: #{tpu_custom_call.1} parent=1 // loop_header_branch
      %22 = sbr.rel (%p20) target = $region8
    $region5: #{tpu_custom_call.1} parent=1 // loop_body
      %s24 = ssub.s32 %s19, 1
      %s25 = ssub.s32 %s19, 2
      %s32 = sadd.s32 1, %s27
      %p33 = scmp.ge.s32.totalorder %s32, 1
      %s34 = scalar_select %p33, 0, %s32
      %s35 = sadd.s32 1, %s26
      %s36 = scalar_select %p33, %s35, %s26
      %p37 = scmp.ge.s32.totalorder %s36, 2
      %s38 = scalar_select %p37, 0, %s36
      %s39 = ssub.s32 %s26, %s38
      %s40 = ssub.s32 %s27, %s34
      %s41 = sor.u32 %s39, %s40
      %p42 = scmp.eq.s32.totalorder %s41, 0
      %s44 = sadd.s32 %s43, 1
      %s45 = scalar_select %p42, %s43, %s44
      %p48 = pneg %p42
      %p49 = scmp.eq.s32.totalorder %s19, 1
      %p50 = por %p48, %p49
      %p51 = scmp.ne.s32.totalorder %s43, %s46
      %p52 = scmp.eq.s32.totalorder %s19, 0
      %p53 = por %p51, %p52
      %p54 = scmp.ne.s32.totalorder %s43, %s46
      %p55 = scmp.eq.s32.totalorder %s24, 1
      %p56 = por %p54, %p55
      %p57 = scmp.ne.s32.totalorder %s46, %s47
      %p58 = scmp.eq.s32.totalorder %s24, 0
      %p59 = por %p57, %p58
      %p60 = scmp.ne.s32.totalorder %s46, %s47
      %p61 = scmp.eq.s32.totalorder %s25, 1
      %p62 = por %p60, %p61
      %p64 = scmp.ne.s32.totalorder %s47, %s63
      %p65 = scmp.eq.s32.totalorder %s25, 0
      %p66 = por %p64, %p65
      %s67 = ssub.s32 %s26, %s38
      %p68 = scmp.eq.s32.totalorder %s67, 0
      %s70 = sadd.s32 %s69, 1
      %s71 = scalar_select %p68, %s69, %s70
      %p74 = pneg %p68
      %p75 = scmp.eq.s32.totalorder %s19, 1
      %p76 = por %p74, %p75
      %p77 = scmp.ne.s32.totalorder %s69, %s72
      %p78 = scmp.eq.s32.totalorder %s19, 0
      %p79 = por %p77, %p78
      %p80 = scmp.ne.s32.totalorder %s69, %s72
      %p81 = scmp.eq.s32.totalorder %s24, 1
      %p82 = por %p80, %p81
      %p83 = scmp.ne.s32.totalorder %s72, %s73
      %p84 = scmp.eq.s32.totalorder %s24, 0
      %p85 = por %p83, %p84
      %p86 = scmp.ne.s32.totalorder %s72, %s73
      %p87 = scmp.eq.s32.totalorder %s25, 1
      %p88 = por %p86, %p87
      %p90 = scmp.ne.s32.totalorder %s73, %s89
      %p91 = scmp.eq.s32.totalorder %s25, 0
      %p92 = por %p90, %p91
      %s93 = ssub.s32 %s26, %s38
      %p94 = scmp.eq.s32.totalorder %s93, 0
      %s96 = sadd.s32 %s95, 1
      %s97 = scalar_select %p94, %s95, %s96
      %p100 = pneg %p94
      %p101 = scmp.eq.s32.totalorder %s19, 1
      %p102 = por %p100, %p101
      %p103 = scmp.ne.s32.totalorder %s95, %s98
      %p104 = scmp.eq.s32.totalorder %s19, 0
      %p105 = por %p103, %p104
      %p106 = scmp.ne.s32.totalorder %s95, %s98
      %p107 = scmp.eq.s32.totalorder %s24, 1
      %p108 = por %p106, %p107
      %p109 = scmp.ne.s32.totalorder %s98, %s99
      %p110 = scmp.eq.s32.totalorder %s24, 0
      %p111 = por %p109, %p110
      %p112 = scmp.ne.s32.totalorder %s98, %s99
      %p113 = scmp.eq.s32.totalorder %s25, 1
      %p114 = por %p112, %p113
      %p116 = scmp.ne.s32.totalorder %s99, %s115
      %p117 = scmp.eq.s32.totalorder %s25, 0
      %p118 = por %p116, %p117
      %s119 = ssub.s32 %s26, %s38
      %s120 = ssub.s32 %s27, %s34
      %s121 = sor.u32 %s119, %s120
      %p122 = scmp.eq.s32.totalorder %s121, 0
      %s124 = sadd.s32 %s123, 1
      %s125 = scalar_select %p122, %s123, %s124
      %p128 = pneg %p122
      %p129 = scmp.eq.s32.totalorder %s19, 1
      %p130 = por %p128, %p129
      %p131 = scmp.ne.s32.totalorder %s123, %s126
      %p132 = scmp.eq.s32.totalorder %s19, 0
      %p133 = por %p131, %p132
      %p134 = scmp.ne.s32.totalorder %s123, %s126
      %p135 = scmp.eq.s32.totalorder %s24, 1
      %p136 = por %p134, %p135
      %p137 = scmp.ne.s32.totalorder %s126, %s127
      %p138 = scmp.eq.s32.totalorder %s24, 0
      %p139 = por %p137, %p138
      %p140 = scmp.ne.s32.totalorder %s126, %s127
      %p141 = scmp.eq.s32.totalorder %s25, 1
      %p142 = por %p140, %p141
      %p144 = scmp.ne.s32.totalorder %s127, %s143
      %p145 = scmp.eq.s32.totalorder %s25, 0
      %p146 = por %p144, %p145
      %s147 = ssub.s32 %s26, %s38
      %p148 = scmp.eq.s32.totalorder %s147, 0
      %s150 = sadd.s32 %s149, 1
      %s151 = scalar_select %p148, %s149, %s150
      %p154 = pneg %p148
      %p155 = scmp.eq.s32.totalorder %s19, 1
      %p156 = por %p154, %p155
      %p157 = scmp.ne.s32.totalorder %s149, %s152
      %p158 = scmp.eq.s32.totalorder %s19, 0
      %p159 = por %p157, %p158
      %p160 = scmp.ne.s32.totalorder %s149, %s152
      %p161 = scmp.eq.s32.totalorder %s24, 1
      %p162 = por %p160, %p161
      %p163 = scmp.ne.s32.totalorder %s152, %s153
      %p164 = scmp.eq.s32.totalorder %s24, 0
      %p165 = por %p163, %p164
      %p166 = scmp.ne.s32.totalorder %s152, %s153
      %p167 = scmp.eq.s32.totalorder %s25, 1
      %p168 = por %p166, %p167
      %p170 = scmp.ne.s32.totalorder %s153, %s169
      %p171 = scmp.eq.s32.totalorder %s25, 0
      %p172 = por %p170, %p171
      %s174 = sadd.s32 %s173, 1
      %p177 = scmp.eq.s32.totalorder %s19, 1
      %p178 = scmp.ne.s32.totalorder %s173, %s175
      %p179 = scmp.eq.s32.totalorder %s19, 0
      %p180 = por %p178, %p179
      %p181 = scmp.ne.s32.totalorder %s173, %s175
      %p182 = scmp.eq.s32.totalorder %s24, 1
      %p183 = por %p181, %p182
      %p184 = scmp.ne.s32.totalorder %s175, %s176
      %p185 = scmp.eq.s32.totalorder %s24, 0
      %p186 = por %p184, %p185
      %p187 = scmp.ne.s32.totalorder %s175, %s176
      %p188 = scmp.eq.s32.totalorder %s25, 1
      %p189 = por %p187, %p188
      %p191 = scmp.ne.s32.totalorder %s176, %s190
      %p192 = scmp.eq.s32.totalorder %s25, 0
      %p193 = por %p191, %p192
      %s194 = ssub.s32 %s26, %s38
      %s195 = ssub.s32 %s27, %s34
      %s196 = sor.u32 %s194, %s195
      %p197 = scmp.eq.s32.totalorder %s196, 0
      %s199 = sadd.s32 %s198, 1
      %s200 = scalar_select %p197, %s198, %s199
      %p203 = pneg %p197
      %p204 = scmp.eq.s32.totalorder %s19, 1
      %p205 = por %p203, %p204
      %p206 = scmp.ne.s32.totalorder %s198, %s201
      %p207 = scmp.eq.s32.totalorder %s19, 0
      %p208 = por %p206, %p207
      %p209 = scmp.ne.s32.totalorder %s198, %s201
      %p210 = scmp.eq.s32.totalorder %s24, 1
      %p211 = por %p209, %p210
      %p212 = scmp.ne.s32.totalorder %s201, %s202
      %p213 = scmp.eq.s32.totalorder %s24, 0
      %p214 = por %p212, %p213
      %p215 = scmp.ne.s32.totalorder %s201, %s202
      %p216 = scmp.eq.s32.totalorder %s25, 1
      %p217 = por %p215, %p216
      %p219 = scmp.ne.s32.totalorder %s202, %s218
      %p220 = scmp.eq.s32.totalorder %s25, 0
      %p221 = por %p219, %p220
      %p222 = scmp.le.s32.totalorder 1, %s19
      %p223 = scmp.lt.s32.totalorder %s19, 3
      %p224 = pnand %p222, %p223
      %p225 = pneg %p224
      // Predicated region
      $region9: #{tpu_custom_call.1} parent=5 // pred_check
        _
      $region10: #{tpu_custom_call.1} parent=5 // pred_check_branch
        %227 = sbr.rel (%p224) target = $region12
      $region11: #{tpu_custom_call.1} parent=5 // pred_region
        %s228 = ssub.s32 %s19, 1
        // Predicated region
        $region13: #{tpu_custom_call.1} parent=11 // pred_check
          %p229 = pneg %p186
        $region14: #{tpu_custom_call.1} parent=11 // pred_check_branch
          %231 = sbr.rel (%p229) target = $region16
        $region15: #{tpu_custom_call.1} parent=11 // pred_region
          %s233 = ssub.s32 2048, 2048
          %234 = vsyncadd [#allocation8], %s233
          %s235 = sshll.u32 [#allocation7], 4
          %s236 = int_to_ptr.vmem [resolvable:$true] %s235
          %241 = dma.hbm_to_vmem [thread:$0]  %s5, 2048, %s236, [#allocation8], 128, 128, 8
        $region16: #{tpu_custom_call.1} parent=11 // pred_fallthru
          _
      $region12: #{tpu_custom_call.1} parent=5 // pred_fallthru
        _
      %p242 = scmp.lt.s32.totalorder %s19, 2
      // Predicated region
      $region17: #{tpu_custom_call.1} parent=5 // pred_check
        %p243 = pneg %p242
      $region18: #{tpu_custom_call.1} parent=5 // pred_check_branch
        %245 = sbr.rel (%p243) target = $region20
      $region19: #{tpu_custom_call.1} parent=5 // pred_region
        // Predicated region
        $region21: #{tpu_custom_call.1} parent=19 // pred_check
          %p246 = pneg %p53
        $region22: #{tpu_custom_call.1} parent=19 // pred_check_branch
          %248 = sbr.rel (%p246) target = $region24
        $region23: #{tpu_custom_call.1} parent=19 // pred_region
          %s249 = smul.u32 2, %s27
          %p250 = scmp.lt.s32.totalorder %s26, 1
          %s251 = scalar_select %p250, %s26, 1
          %p252 = scmp.lt.s32.totalorder %s249, 1
          %s253 = scalar_select %p252, %s249, 1
          %s254 = smul.addr %s251, 2
          %s255 = sadd.s32 %s253, %s254
          %s256 = smul.addr %s255, 8
          %s257 = scalar_lea.vmem %s0, %s256
          %s258 = smul.u32 2, %s27
        $region24: #{tpu_custom_call.1} parent=19 // pred_fallthru
          _
        // Predicated region
        $region25: #{tpu_custom_call.1} parent=19 // pred_check
          %p259 = pneg %p79
        $region26: #{tpu_custom_call.1} parent=19 // pred_check_branch
          %261 = sbr.rel (%p259) target = $region28
        $region27: #{tpu_custom_call.1} parent=19 // pred_region
          %p262 = scmp.lt.s32.totalorder %s26, 1
          %s263 = scalar_select %p262, %s26, 1
          %s264 = smul.addr %s263, 8
          %s265 = scalar_lea.vmem %s1, %s264
        $region28: #{tpu_custom_call.1} parent=19 // pred_fallthru
          _
        // Predicated region
        $region29: #{tpu_custom_call.1} parent=19 // pred_check
          %p266 = pneg %p105
        $region30: #{tpu_custom_call.1} parent=19 // pred_check_branch
          %268 = sbr.rel (%p266) target = $region32
        $region31: #{tpu_custom_call.1} parent=19 // pred_region
          %s269 = sand.u32 %s95, 1
          %s270 = scalar_lea.sflag [#allocation5], %s269
          %s271 = sand.u32 %s95, 1
          %s272 = smul.addr %s271, 8
          %s273 = scalar_lea.vmem [#allocation4], %s272
          %s275 = ssub.s32 128, 128
          %276 = vsyncadd %s270, %s275
          %s277 = smul.addr %s26, 128
          %s278 = scalar_lea.hbm %s2, %s277
          %s280 = sshll.u32 %s273, 4
          %s281 = int_to_ptr.vmem [resolvable:$true] %s280
          %283 = dma.hbm_to_vmem [thread:$0]  %s278, 128, %s281, %s270
        $region32: #{tpu_custom_call.1} parent=19 // pred_fallthru
          _
        // Predicated region
        $region33: #{tpu_custom_call.1} parent=19 // pred_check
          %p284 = pneg %p133
        $region34: #{tpu_custom_call.1} parent=19 // pred_check_branch
          %286 = sbr.rel (%p284) target = $region36
        $region35: #{tpu_custom_call.1} parent=19 // pred_region
          %s287 = smul.u32 2, %s27
          %p288 = scmp.lt.s32.totalorder %s26, 1
          %s289 = scalar_select %p288, %s26, 1
          %p290 = scmp.lt.s32.totalorder %s287, 1
          %s291 = scalar_select %p290, %s287, 1
          %s292 = smul.addr %s289, 2
          %s293 = sadd.s32 %s291, %s292
          %s294 = smul.addr %s293, 8
          %s295 = scalar_lea.vmem %s3, %s294
          %s296 = smul.u32 2, %s27
        $region36: #{tpu_custom_call.1} parent=19 // pred_fallthru
          _
        // Predicated region
        $region37: #{tpu_custom_call.1} parent=19 // pred_check
          %p297 = pneg %p159
        $region38: #{tpu_custom_call.1} parent=19 // pred_check_branch
          %299 = sbr.rel (%p297) target = $region40
        $region39: #{tpu_custom_call.1} parent=19 // pred_region
          %p300 = scmp.lt.s32.totalorder %s26, 1
          %s301 = scalar_select %p300, %s26, 1
          %s302 = smul.addr %s301, 8
          %s303 = scalar_lea.vmem %s4, %s302
        $region40: #{tpu_custom_call.1} parent=19 // pred_fallthru
          _
      $region20: #{tpu_custom_call.1} parent=5 // pred_fallthru
        _
      %p304 = scmp.le.s32.totalorder 1, %s19
      %p305 = scmp.lt.s32.totalorder %s19, 3
      %p306 = pnand %p304, %p305
      %p307 = pneg %p306
      // Predicated region
      $region41: #{tpu_custom_call.1} parent=5 // pred_check
        _
      $region42: #{tpu_custom_call.1} parent=5 // pred_check_branch
        %309 = sbr.rel (%p306) target = $region44
      $region43: #{tpu_custom_call.1} parent=5 // pred_region
        %s310 = ssub.s32 %s19, 1
        %s311 = sand.u32 %s98, 1
        %s312 = scalar_lea.sflag [#allocation5], %s311
        %s313 = sand.u32 %s98, 1
        %s314 = smul.addr %s313, 8
        %s315 = scalar_lea.vmem [#allocation4], %s314
        // Predicated region
        $region45: #{tpu_custom_call.1} parent=43 // pred_check
          %p316 = pneg %p111
        $region46: #{tpu_custom_call.1} parent=43 // pred_check_branch
          %318 = sbr.rel (%p316) target = $region48
        $region47: #{tpu_custom_call.1} parent=43 // pred_region
          %319 = dma.done %s312, 128
        $region48: #{tpu_custom_call.1} parent=43 // pred_fallthru
          _
        // Predicated region
        $region49: #{tpu_custom_call.1} parent=43 // pred_check
          %p320 = pneg %p186
        $region50: #{tpu_custom_call.1} parent=43 // pred_check_branch
          %322 = sbr.rel (%p320) target = $region52
        $region51: #{tpu_custom_call.1} parent=43 // pred_region
          %323 = dma.done [#allocation8], 2048
        $region52: #{tpu_custom_call.1} parent=43 // pred_fallthru
          _
        %s324 = smul.u32 2, %s29
        %p325 = scmp.lt.s32.totalorder %s28, 1
        %s326 = scalar_select %p325, %s28, 1
        %p327 = scmp.lt.s32.totalorder %s324, 1
        %s328 = scalar_select %p327, %s324, 1
        %s329 = smul.addr %s326, 2
        %s330 = sadd.s32 %s328, %s329
        %s331 = smul.addr %s330, 8
        %s332 = scalar_lea.vmem %s0, %s331
        %p333 = pneg %p59
        %p334 = pneg %p56
        %p335 = scmp.lt.s32.totalorder %s28, 1
        %s336 = scalar_select %p335, %s28, 1
        %s337 = smul.addr %s336, 8
        %s338 = scalar_lea.vmem %s1, %s337
        %p339 = pneg %p85
        %p340 = pneg %p82
        %s341 = sand.u32 %s98, 1
        %s342 = scalar_lea.sflag [#allocation5], %s341
        %s343 = sand.u32 %s98, 1
        %s344 = smul.addr %s343, 8
        %s345 = scalar_lea.vmem [#allocation4], %s344
        %p346 = pneg %p111
        %p347 = pneg %p108
        %s348 = smul.u32 2, %s29
        %p349 = scmp.lt.s32.totalorder %s28, 1
        %s350 = scalar_select %p349, %s28, 1
        %p351 = scmp.lt.s32.totalorder %s348, 1
        %s352 = scalar_select %p351, %s348, 1
        %s353 = smul.addr %s350, 2
        %s354 = sadd.s32 %s352, %s353
        %s355 = smul.addr %s354, 8
        %s356 = scalar_lea.vmem %s3, %s355
        %p357 = pneg %p139
        %p358 = pneg %p136
        %p359 = scmp.lt.s32.totalorder %s28, 1
        %s360 = scalar_select %p359, %s28, 1
        %s361 = smul.addr %s360, 8
        %s362 = scalar_lea.vmem %s4, %s361
        %p363 = pneg %p165
        %p364 = pneg %p162
        %p365 = pneg %p186
        %p366 = pneg %p183
        %p367 = pneg %p214
        %p368 = pneg %p211
        %s369 = sand.u32 %s201, 1
        %s370 = scalar_lea.sflag [#allocation6], %s369
        %s371 = sand.u32 %s201, 1
        %s372 = smul.addr %s371, 16
        %s373 = scalar_lea.vmem [#allocation9], %s372
        %s374 = smul.u32 2, %s29
        %p375 = scmp.lt.s32.totalorder %s28, 1
        %s376 = scalar_select %p375, %s28, 1
        %p377 = scmp.lt.s32.totalorder %s374, 1
        %s378 = scalar_select %p377, %s374, 1
        %s379 = smul.addr %s376, 2
        %s380 = sadd.s32 %s378, %s379
        %s381 = smul.addr %s380, 8
        %s382 = scalar_lea.vmem %s0, %s381
        %s383 = smul.u32 2, %s29
        %p384 = scmp.lt.s32.totalorder %s28, 1
        %s385 = scalar_select %p384, %s28, 1
        %s386 = smul.addr %s385, 8
        %s387 = scalar_lea.vmem %s1, %s386
        %s388 = smul.u32 2, %s29
        %p389 = scmp.lt.s32.totalorder %s28, 1
        %s390 = scalar_select %p389, %s28, 1
        %p391 = scmp.lt.s32.totalorder %s388, 1
        %s392 = scalar_select %p391, %s388, 1
        %s393 = smul.addr %s390, 2
        %s394 = sadd.s32 %s392, %s393
        %s395 = smul.addr %s394, 8
        %s396 = scalar_lea.vmem %s3, %s395
        %s397 = smul.u32 2, %s29
        %p398 = scmp.lt.s32.totalorder %s28, 1
        %s399 = scalar_select %p398, %s28, 1
        %s400 = smul.addr %s399, 8
        %s401 = scalar_lea.vmem %s4, %s400
        %s402 = smul.u32 2, %s29
        %p403 = scmp.eq.s32.totalorder %s29, 0
        // Predicated region
        $region53: #{tpu_custom_call.1} parent=43 // pred_check
          %p404 = pneg %p403
        $region54: #{tpu_custom_call.1} parent=43 // pred_check_branch
          %406 = sbr.rel (%p404) target = $region56
        $region55: #{tpu_custom_call.1} parent=43 // pred_region
          %v407 = vld [vmem:[%s387] sm:$0xff]
          %v408 = vld [vmem:[%s315] sm:$0xff]
          %v409 = vld [vmem:[%s401] sm:$0xff]
          %vm410 = vcmp.gt.f32.partialorder %v407, 0.0
          %v411 = vadd.f32 %v407, 1.0
          %v412 = vmul.f32 %v407, 1.442695
          %v413 = vpow.pop %v412
          %v414 = vsel %vm410, %v411, %v413
          %416 = vset.pattern.permute.xlu0 0
          %417 = vperm.xlu0 %416, %v409
          %v418 = vpop.permute.xlu0 %417
          %v420 = vmul.f32 %v414, %v418
          %v421 = vmul.f32 %v408, %v418
          %v422 = vrot.slane %v420, 4
          %v423 = vadd.f32 %v420, %v422
          %v424 = vrot.slane %v423, 2
          %v425 = vadd.f32 %v423, %v424
          %v426 = vrot.slane %v425, 1
          %v427 = vadd.f32 %v425, %v426
          %428 = vst [vmem:[#allocation3] sm:$0x1] %v427
          %429 = vxpose.xlu0.b32.start [1/16] %v420, 128
          %430 = vxpose.xlu0.b32.cont [2/16] 0.0, 128
          %431 = vxpose.xlu0.b32.cont [3/16] 0.0, 128
          %432 = vxpose.xlu0.b32.cont [4/16] 0.0, 128
          %433 = vxpose.xlu0.b32.cont [5/16] 0.0, 128
          %434 = vxpose.xlu0.b32.cont [6/16] 0.0, 128
          %435 = vxpose.xlu0.b32.cont [7/16] 0.0, 128
          %436 = vxpose.xlu0.b32.cont [8/16] 0.0, 128
          %437 = vxpose.xlu0.b32.cont [9/16] 0.0, 128
          %438 = vxpose.xlu0.b32.cont [10/16] 0.0, 128
          %439 = vxpose.xlu0.b32.cont [11/16] 0.0, 128
          %440 = vxpose.xlu0.b32.cont [12/16] 0.0, 128
          %441 = vxpose.xlu0.b32.cont [13/16] 0.0, 128
          %442 = vxpose.xlu0.b32.cont [14/16] 0.0, 128
          %443 = vxpose.xlu0.b32.cont [15/16] 0.0, 128
          %444 = vxpose.xlu0.b32.end [16/16] 0.0, 128
          %v445 = vpop.trf.xlu0
          %v446 = vpop.trf.xlu0
          %v447 = vpop.trf.xlu0
          %v448 = vpop.trf.xlu0
          %v449 = vpop.trf.xlu0
          %v450 = vpop.trf.xlu0
          %v451 = vpop.trf.xlu0
          %v452 = vpop.trf.xlu0
          %v453 = vpop.trf.xlu0
          %v454 = vpop.trf.xlu0
          %v455 = vpop.trf.xlu0
          %v456 = vpop.trf.xlu0
          %v457 = vpop.trf.xlu0
          %v458 = vpop.trf.xlu0
          %v459 = vpop.trf.xlu0
          %v460 = vpop.trf.xlu0
          %vm461 = vcmask 64512
          %v463 = vsel %vm461, %v445, 0
          %v466 = vsel %vm461, %v446, 0
          %v469 = vsel %vm461, %v447, 0
          %v472 = vsel %vm461, %v448, 0
          %v475 = vsel %vm461, %v449, 0
          %v478 = vsel %vm461, %v450, 0
          %v481 = vsel %vm461, %v451, 0
          %v484 = vsel %vm461, %v452, 0
          %v487 = vsel %vm461, %v453, 0
          %v490 = vsel %vm461, %v454, 0
          %v493 = vsel %vm461, %v455, 0
          %v496 = vsel %vm461, %v456, 0
          %v499 = vsel %vm461, %v457, 0
          %v502 = vsel %vm461, %v458, 0
          %v505 = vsel %vm461, %v459, 0
          %v508 = vsel %vm461, %v460, 0
          %510 = vmatprep.subr.mxu0 0.0
          %511 = vmatpush1.msra.mxu0 0.0
          %512 = vmatprep.subr.mxu0 0.0
          %513 = vmatpush1.msra.mxu0 0.0
          %514 = vmatprep.subr.mxu0 0.0
          %515 = vmatpush1.msra.mxu0 0.0
          %516 = vmatprep.subr.mxu0 0.0
          %517 = vmatpush1.msra.mxu0 0.0
          %518 = vmatprep.subr.mxu0 0.0
          %519 = vmatpush1.msra.mxu0 0.0
          %520 = vmatprep.subr.mxu0 0.0
          %521 = vmatpush1.msra.mxu0 0.0
          %522 = vmatprep.subr.mxu0 0.0
          %523 = vmatpush1.msra.mxu0 0.0
          %524 = vmatprep.subr.mxu0 0.0
          %525 = vmatpush1.msra.mxu0 0.0
          %526 = vmatprep.subr.mxu0 0.0
          %527 = vmatpush1.msra.mxu0 0.0
          %528 = vmatprep.subr.mxu0 0.0
          %529 = vmatpush1.msra.mxu0 0.0
          %530 = vmatprep.subr.mxu0 0.0
          %531 = vmatpush1.msra.mxu0 0.0
          %532 = vmatprep.subr.mxu0 0.0
          %533 = vmatpush1.msra.mxu0 0.0
          %534 = vmatprep.subr.mxu0 0.0
          %535 = vmatpush1.msra.mxu0 0.0
          %536 = vmatprep.subr.mxu0 0.0
          %537 = vmatpush1.msra.mxu0 0.0
          %538 = vmatprep.subr.mxu0 0.0
          %539 = vmatpush1.msra.mxu0 0.0
          %540 = vmatprep.subr.mxu0 0.0
          %541 = vmatpush1.msra.mxu0 %v421
          %542 = vmatprep.subr.mxu0 0.0
          %543 = vmatpush2.msra.mxu0 0.0
          %544 = vmatprep.subr.mxu0 0.0
          %545 = vmatpush2.msra.mxu0 0.0
          %546 = vmatprep.subr.mxu0 0.0
          %547 = vmatpush2.msra.mxu0 0.0
          %548 = vmatprep.subr.mxu0 0.0
          %549 = vmatpush2.msra.mxu0 0.0
          %550 = vmatprep.subr.mxu0 0.0
          %551 = vmatpush2.msra.mxu0 0.0
          %552 = vmatprep.subr.mxu0 0.0
          %553 = vmatpush2.msra.mxu0 0.0
          %554 = vmatprep.subr.mxu0 0.0
          %555 = vmatpush2.msra.mxu0 0.0
          %556 = vmatprep.subr.mxu0 0.0
          %557 = vmatpush2.msra.mxu0 0.0
          %558 = vmatprep.subr.mxu0 0.0
          %559 = vmatpush2.msra.mxu0 0.0
          %560 = vmatprep.subr.mxu0 0.0
          %561 = vmatpush2.msra.mxu0 0.0
          %562 = vmatprep.subr.mxu0 0.0
          %563 = vmatpush2.msra.mxu0 0.0
          %564 = vmatprep.subr.mxu0 0.0
          %565 = vmatpush2.msra.mxu0 0.0
          %566 = vmatprep.subr.mxu0 0.0
          %567 = vmatpush2.msra.mxu0 0.0
          %568 = vmatprep.subr.mxu0 0.0
          %569 = vmatpush2.msra.mxu0 0.0
          %570 = vmatprep.subr.mxu0 0.0
          %571 = vmatpush2.msra.mxu0 0.0
          %572 = vmatprep.subr.mxu0 0.0
          %573 = vmatpush2.msra.mxu0 0.0
          %574 = vmatprep.mubr.f32.mxu0 0.0
          %575 = vmatmul.mubr.f32.gmra.mxu0 %v463
          %v576 = vpop.f32.mrf.mxu0
          %v577 = vadd.f32 0.0, %v576
          %v578 = vpop.f32.mrf.mxu0
          %579 = vmatprep.mubr.f32.mxu0 0.0
          %580 = vmatmul.mubr.f32.gmra.mxu0 %v466
          %v581 = vpop.f32.mrf.mxu0
          %v582 = vadd.f32 0.0, %v581
          %v583 = vpop.f32.mrf.mxu0
          %584 = vmatprep.mubr.f32.mxu0 0.0
          %585 = vmatmul.mubr.f32.gmra.mxu0 %v469
          %v586 = vpop.f32.mrf.mxu0
          %v587 = vadd.f32 0.0, %v586
          %v588 = vpop.f32.mrf.mxu0
          %589 = vmatprep.mubr.f32.mxu0 0.0
          %590 = vmatmul.mubr.f32.gmra.mxu0 %v472
          %v591 = vpop.f32.mrf.mxu0
          %v592 = vadd.f32 0.0, %v591
          %v593 = vpop.f32.mrf.mxu0
          %594 = vmatprep.mubr.f32.mxu0 0.0
          %595 = vmatmul.mubr.f32.gmra.mxu0 %v475
          %v596 = vpop.f32.mrf.mxu0
          %v597 = vadd.f32 0.0, %v596
          %v598 = vpop.f32.mrf.mxu0
          %599 = vmatprep.mubr.f32.mxu0 0.0
          %600 = vmatmul.mubr.f32.gmra.mxu0 %v478
          %v601 = vpop.f32.mrf.mxu0
          %v602 = vadd.f32 0.0, %v601
          %v603 = vpop.f32.mrf.mxu0
          %604 = vmatprep.mubr.f32.mxu0 0.0
          %605 = vmatmul.mubr.f32.gmra.mxu0 %v481
          %v606 = vpop.f32.mrf.mxu0
          %v607 = vadd.f32 0.0, %v606
          %v608 = vpop.f32.mrf.mxu0
          %609 = vmatprep.mubr.f32.mxu0 0.0
          %610 = vmatmul.mubr.f32.gmra.mxu0 %v484
          %v611 = vpop.f32.mrf.mxu0
          %v612 = vadd.f32 0.0, %v611
          %v613 = vpop.f32.mrf.mxu0
          %614 = vmatprep.mubr.f32.mxu0 0.0
          %615 = vmatmul.mubr.f32.gmra.mxu0 %v487
          %v616 = vpop.f32.mrf.mxu0
          %v617 = vadd.f32 0.0, %v616
          %v618 = vpop.f32.mrf.mxu0
          %619 = vmatprep.mubr.f32.mxu0 0.0
          %620 = vmatmul.mubr.f32.gmra.mxu0 %v490
          %v621 = vpop.f32.mrf.mxu0
          %v622 = vadd.f32 0.0, %v621
          %v623 = vpop.f32.mrf.mxu0
          %624 = vmatprep.mubr.f32.mxu0 0.0
          %625 = vmatmul.mubr.f32.gmra.mxu0 %v493
          %v626 = vpop.f32.mrf.mxu0
          %v627 = vadd.f32 0.0, %v626
          %v628 = vpop.f32.mrf.mxu0
          %629 = vmatprep.mubr.f32.mxu0 0.0
          %630 = vmatmul.mubr.f32.gmra.mxu0 %v496
          %v631 = vpop.f32.mrf.mxu0
          %v632 = vadd.f32 0.0, %v631
          %v633 = vpop.f32.mrf.mxu0
          %634 = vmatprep.mubr.f32.mxu0 0.0
          %635 = vmatmul.mubr.f32.gmra.mxu0 %v499
          %v636 = vpop.f32.mrf.mxu0
          %v637 = vadd.f32 0.0, %v636
          %v638 = vpop.f32.mrf.mxu0
          %639 = vmatprep.mubr.f32.mxu0 0.0
          %640 = vmatmul.mubr.f32.gmra.mxu0 %v502
          %v641 = vpop.f32.mrf.mxu0
          %v642 = vadd.f32 0.0, %v641
          %v643 = vpop.f32.mrf.mxu0
          %644 = vmatprep.mubr.f32.mxu0 0.0
          %645 = vmatmul.mubr.f32.gmra.mxu0 %v505
          %v646 = vpop.f32.mrf.mxu0
          %v647 = vadd.f32 0.0, %v646
          %v648 = vpop.f32.mrf.mxu0
          %649 = vmatprep.mubr.f32.mxu0 0.0
          %650 = vmatmul.mubr.f32.gmra.mxu0 %v508
          %v651 = vpop.f32.mrf.mxu0
          %v652 = vadd.f32 0.0, %v651
          %v653 = vpop.f32.mrf.mxu0
          %654 = vdwg.mxu0
          %v655 = vld [vmem:[#allocation7] sm:$0xff]
          %v656 = vld [vmem:[#allocation7 + $0x8] sm:$0xff]
          %v657 = vld [vmem:[#allocation7 + $0x10] sm:$0xff]
          %v658 = vld [vmem:[#allocation7 + $0x18] sm:$0xff]
          %v659 = vld [vmem:[#allocation7 + $0x20] sm:$0xff]
          %v660 = vld [vmem:[#allocation7 + $0x28] sm:$0xff]
          %v661 = vld [vmem:[#allocation7 + $0x30] sm:$0xff]
          %v662 = vld [vmem:[#allocation7 + $0x38] sm:$0xff]
          %v663 = vld [vmem:[#allocation7 + $0x40] sm:$0xff]
          %v664 = vld [vmem:[#allocation7 + $0x48] sm:$0xff]
          %v665 = vld [vmem:[#allocation7 + $0x50] sm:$0xff]
          %v666 = vld [vmem:[#allocation7 + $0x58] sm:$0xff]
          %v667 = vld [vmem:[#allocation7 + $0x60] sm:$0xff]
          %v668 = vld [vmem:[#allocation7 + $0x68] sm:$0xff]
          %v669 = vld [vmem:[#allocation7 + $0x70] sm:$0xff]
          %v670 = vld [vmem:[#allocation7 + $0x78] sm:$0xff]
          %v671 = vmul.f32 %v577, %v655
          %v672 = vmul.f32 %v582, %v656
          %v673 = vmul.f32 %v587, %v657
          %v674 = vmul.f32 %v592, %v658
          %v675 = vmul.f32 %v597, %v659
          %v676 = vmul.f32 %v602, %v660
          %v677 = vmul.f32 %v607, %v661
          %v678 = vmul.f32 %v612, %v662
          %v679 = vmul.f32 %v617, %v663
          %v680 = vmul.f32 %v622, %v664
          %v681 = vmul.f32 %v627, %v665
          %v682 = vmul.f32 %v632, %v666
          %v683 = vmul.f32 %v637, %v667
          %v684 = vmul.f32 %v642, %v668
          %v685 = vmul.f32 %v647, %v669
          %v686 = vmul.f32 %v652, %v670
          %687 = vst [vmem:[#allocation2] sm:$0xff] %v671
          %688 = vst [vmem:[#allocation2 + $0x8] sm:$0xff] %v672
          %689 = vst [vmem:[#allocation2 + $0x10] sm:$0xff] %v673
          %690 = vst [vmem:[#allocation2 + $0x18] sm:$0xff] %v674
          %691 = vst [vmem:[#allocation2 + $0x20] sm:$0xff] %v675
          %692 = vst [vmem:[#allocation2 + $0x28] sm:$0xff] %v676
          %693 = vst [vmem:[#allocation2 + $0x30] sm:$0xff] %v677
          %694 = vst [vmem:[#allocation2 + $0x38] sm:$0xff] %v678
          %695 = vst [vmem:[#allocation2 + $0x40] sm:$0xff] %v679
          %696 = vst [vmem:[#allocation2 + $0x48] sm:$0xff] %v680
          %697 = vst [vmem:[#allocation2 + $0x50] sm:$0xff] %v681
          %698 = vst [vmem:[#allocation2 + $0x58] sm:$0xff] %v682
          %699 = vst [vmem:[#allocation2 + $0x60] sm:$0xff] %v683
          %700 = vst [vmem:[#allocation2 + $0x68] sm:$0xff] %v684
          %701 = vst [vmem:[#allocation2 + $0x70] sm:$0xff] %v685
          %702 = vst [vmem:[#allocation2 + $0x78] sm:$0xff] %v686
        $region56: #{tpu_custom_call.1} parent=43 // pred_fallthru
          _
        %v703 = vld [vmem:[%s382] sm:$0xff]
        %v704 = vld [vmem:[%s382 + $0x8] sm:$0xff]
        %v705 = vld [vmem:[%s396] sm:$0xff]
        %v706 = vld [vmem:[%s396 + $0x8] sm:$0xff]
        %vm707 = vcmp.gt.f32.partialorder %v703, 0.0
        %vm708 = vcmp.gt.f32.partialorder %v704, 0.0
        %v709 = vadd.f32 %v703, 1.0
        %v710 = vadd.f32 %v704, 1.0
        %v711 = vmul.f32 %v703, 1.442695
        %v712 = vpow.pop %v711
        %v713 = vmul.f32 %v704, 1.442695
        %v714 = vpow.pop %v713
        %v715 = vsel %vm707, %v709, %v712
        %v716 = vsel %vm708, %v710, %v714
        %718 = vset.pattern.permute.xlu0 0
        %719 = vperm.xlu0 %718, %v705
        %v720 = vpop.permute.xlu0 %719
        %723 = vset.pattern.permute.xlu0 0
        %724 = vperm.xlu0 %723, %v706
        %v725 = vpop.permute.xlu0 %724
        %v727 = vmul.f32 %v715, %v720
        %v728 = vmul.f32 %v716, %v725
        %v729 = vld [vmem:[#allocation2] sm:$0xff]
        %v730 = vld [vmem:[#allocation2 + $0x8] sm:$0xff]
        %v731 = vld [vmem:[#allocation2 + $0x10] sm:$0xff]
        %v732 = vld [vmem:[#allocation2 + $0x18] sm:$0xff]
        %v733 = vld [vmem:[#allocation2 + $0x20] sm:$0xff]
        %v734 = vld [vmem:[#allocation2 + $0x28] sm:$0xff]
        %v735 = vld [vmem:[#allocation2 + $0x30] sm:$0xff]
        %v736 = vld [vmem:[#allocation2 + $0x38] sm:$0xff]
        %v737 = vld [vmem:[#allocation2 + $0x40] sm:$0xff]
        %v738 = vld [vmem:[#allocation2 + $0x48] sm:$0xff]
        %v739 = vld [vmem:[#allocation2 + $0x50] sm:$0xff]
        %v740 = vld [vmem:[#allocation2 + $0x58] sm:$0xff]
        %v741 = vld [vmem:[#allocation2 + $0x60] sm:$0xff]
        %v742 = vld [vmem:[#allocation2 + $0x68] sm:$0xff]
        %v743 = vld [vmem:[#allocation2 + $0x70] sm:$0xff]
        %v744 = vld [vmem:[#allocation2 + $0x78] sm:$0xff]
        %745 = vmatprep.subr.mxu0 0.0
        %746 = vmatpush1.msra.mxu0 %v744
        %747 = vmatprep.subr.mxu0 0.0
        %748 = vmatpush1.msra.mxu0 %v743
        %749 = vmatprep.subr.mxu0 0.0
        %750 = vmatpush1.msra.mxu0 %v742
        %751 = vmatprep.subr.mxu0 0.0
        %752 = vmatpush1.msra.mxu0 %v741
        %753 = vmatprep.subr.mxu0 0.0
        %754 = vmatpush1.msra.mxu0 %v740
        %755 = vmatprep.subr.mxu0 0.0
        %756 = vmatpush1.msra.mxu0 %v739
        %757 = vmatprep.subr.mxu0 0.0
        %758 = vmatpush1.msra.mxu0 %v738
        %759 = vmatprep.subr.mxu0 0.0
        %760 = vmatpush1.msra.mxu0 %v737
        %761 = vmatprep.subr.mxu0 0.0
        %762 = vmatpush1.msra.mxu0 %v736
        %763 = vmatprep.subr.mxu0 0.0
        %764 = vmatpush1.msra.mxu0 %v735
        %765 = vmatprep.subr.mxu0 0.0
        %766 = vmatpush1.msra.mxu0 %v734
        %767 = vmatprep.subr.mxu0 0.0
        %768 = vmatpush1.msra.mxu0 %v733
        %769 = vmatprep.subr.mxu0 0.0
        %770 = vmatpush1.msra.mxu0 %v732
        %771 = vmatprep.subr.mxu0 0.0
        %772 = vmatpush1.msra.mxu0 %v731
        %773 = vmatprep.subr.mxu0 0.0
        %774 = vmatpush1.msra.mxu0 %v730
        %775 = vmatprep.subr.mxu0 0.0
        %776 = vmatpush1.msra.mxu0 %v729
        %777 = vmatprep.subr.mxu0 0.0
        %778 = vmatpush2.msra.mxu0 0.0
        %779 = vmatprep.subr.mxu0 0.0
        %780 = vmatpush2.msra.mxu0 0.0
        %781 = vmatprep.subr.mxu0 0.0
        %782 = vmatpush2.msra.mxu0 0.0
        %783 = vmatprep.subr.mxu0 0.0
        %784 = vmatpush2.msra.mxu0 0.0
        %785 = vmatprep.subr.mxu0 0.0
        %786 = vmatpush2.msra.mxu0 0.0
        %787 = vmatprep.subr.mxu0 0.0
        %788 = vmatpush2.msra.mxu0 0.0
        %789 = vmatprep.subr.mxu0 0.0
        %790 = vmatpush2.msra.mxu0 0.0
        %791 = vmatprep.subr.mxu0 0.0
        %792 = vmatpush2.msra.mxu0 0.0
        %793 = vmatprep.subr.mxu0 0.0
        %794 = vmatpush2.msra.mxu0 0.0
        %795 = vmatprep.subr.mxu0 0.0
        %796 = vmatpush2.msra.mxu0 0.0
        %797 = vmatprep.subr.mxu0 0.0
        %798 = vmatpush2.msra.mxu0 0.0
        %799 = vmatprep.subr.mxu0 0.0
        %800 = vmatpush2.msra.mxu0 0.0
        %801 = vmatprep.subr.mxu0 0.0
        %802 = vmatpush2.msra.mxu0 0.0
        %803 = vmatprep.subr.mxu0 0.0
        %804 = vmatpush2.msra.mxu0 0.0
        %805 = vmatprep.subr.mxu0 0.0
        %806 = vmatpush2.msra.mxu0 0.0
        %807 = vmatprep.subr.mxu0 0.0
        %808 = vmatpush2.msra.mxu0 0.0
        %809 = vmatprep.mubr.f32.mxu0 0.0
        %810 = vmatmul.mubr.f32.gmra.mxu0 %v727
        %v811 = vpop.f32.mrf.mxu0
        %v812 = vadd.f32 0.0, %v811
        %v813 = vpop.f32.mrf.mxu0
        %814 = vmatprep.mubr.f32.mxu0 0.0
        %815 = vmatmul.mubr.f32.gmra.mxu0 %v728
        %v816 = vpop.f32.mrf.mxu0
        %v817 = vadd.f32 0.0, %v816
        %v818 = vpop.f32.mrf.mxu0
        %819 = vdwg.mxu0
        %v820 = vld [vmem:[#allocation3] sm:$0x1]
        %v822 = vlaneseq
        %v823 = vshrl.u32 %v822, 7
        %v824 = vsub.s32 0, %v823
        %v825 = vrot.slane %v820, %v824
        %v827 = vmul.f32 %v727, %v825
        %v828 = vmul.f32 %v728, %v825
        %v829 = vld [vmem:[#allocation7] sm:$0xff]
        %v830 = vld [vmem:[#allocation7 + $0x8] sm:$0xff]
        %v831 = vld [vmem:[#allocation7 + $0x10] sm:$0xff]
        %v832 = vld [vmem:[#allocation7 + $0x18] sm:$0xff]
        %v833 = vld [vmem:[#allocation7 + $0x20] sm:$0xff]
        %v834 = vld [vmem:[#allocation7 + $0x28] sm:$0xff]
        %v835 = vld [vmem:[#allocation7 + $0x30] sm:$0xff]
        %v836 = vld [vmem:[#allocation7 + $0x38] sm:$0xff]
        %v837 = vld [vmem:[#allocation7 + $0x40] sm:$0xff]
        %v838 = vld [vmem:[#allocation7 + $0x48] sm:$0xff]
        %v839 = vld [vmem:[#allocation7 + $0x50] sm:$0xff]
        %v840 = vld [vmem:[#allocation7 + $0x58] sm:$0xff]
        %v841 = vld [vmem:[#allocation7 + $0x60] sm:$0xff]
        %v842 = vld [vmem:[#allocation7 + $0x68] sm:$0xff]
        %v843 = vld [vmem:[#allocation7 + $0x70] sm:$0xff]
        %v844 = vld [vmem:[#allocation7 + $0x78] sm:$0xff]
        %845 = vmatprep.subr.mxu0 0.0
        %846 = vmatpush1.msra.mxu0 %v844
        %847 = vmatprep.subr.mxu0 0.0
        %848 = vmatpush1.msra.mxu0 %v843
        %849 = vmatprep.subr.mxu0 0.0
        %850 = vmatpush1.msra.mxu0 %v842
        %851 = vmatprep.subr.mxu0 0.0
        %852 = vmatpush1.msra.mxu0 %v841
        %853 = vmatprep.subr.mxu0 0.0
        %854 = vmatpush1.msra.mxu0 %v840
        %855 = vmatprep.subr.mxu0 0.0
        %856 = vmatpush1.msra.mxu0 %v839
        %857 = vmatprep.subr.mxu0 0.0
        %858 = vmatpush1.msra.mxu0 %v838
        %859 = vmatprep.subr.mxu0 0.0
        %860 = vmatpush1.msra.mxu0 %v837
        %861 = vmatprep.subr.mxu0 0.0
        %862 = vmatpush1.msra.mxu0 %v836
        %863 = vmatprep.subr.mxu0 0.0
        %864 = vmatpush1.msra.mxu0 %v835
        %865 = vmatprep.subr.mxu0 0.0
        %866 = vmatpush1.msra.mxu0 %v834
        %867 = vmatprep.subr.mxu0 0.0
        %868 = vmatpush1.msra.mxu0 %v833
        %869 = vmatprep.subr.mxu0 0.0
        %870 = vmatpush1.msra.mxu0 %v832
        %871 = vmatprep.subr.mxu0 0.0
        %872 = vmatpush1.msra.mxu0 %v831
        %873 = vmatprep.subr.mxu0 0.0
        %874 = vmatpush1.msra.mxu0 %v830
        %875 = vmatprep.subr.mxu0 0.0
        %876 = vmatpush1.msra.mxu0 %v829
        %877 = vmatprep.subr.mxu0 0.0
        %878 = vmatpush2.msra.mxu0 0.0
        %879 = vmatprep.subr.mxu0 0.0
        %880 = vmatpush2.msra.mxu0 0.0
        %881 = vmatprep.subr.mxu0 0.0
        %882 = vmatpush2.msra.mxu0 0.0
        %883 = vmatprep.subr.mxu0 0.0
        %884 = vmatpush2.msra.mxu0 0.0
        %885 = vmatprep.subr.mxu0 0.0
        %886 = vmatpush2.msra.mxu0 0.0
        %887 = vmatprep.subr.mxu0 0.0
        %888 = vmatpush2.msra.mxu0 0.0
        %889 = vmatprep.subr.mxu0 0.0
        %890 = vmatpush2.msra.mxu0 0.0
        %891 = vmatprep.subr.mxu0 0.0
        %892 = vmatpush2.msra.mxu0 0.0
        %893 = vmatprep.subr.mxu0 0.0
        %894 = vmatpush2.msra.mxu0 0.0
        %895 = vmatprep.subr.mxu0 0.0
        %896 = vmatpush2.msra.mxu0 0.0
        %897 = vmatprep.subr.mxu0 0.0
        %898 = vmatpush2.msra.mxu0 0.0
        %899 = vmatprep.subr.mxu0 0.0
        %900 = vmatpush2.msra.mxu0 0.0
        %901 = vmatprep.subr.mxu0 0.0
        %902 = vmatpush2.msra.mxu0 0.0
        %903 = vmatprep.subr.mxu0 0.0
        %904 = vmatpush2.msra.mxu0 0.0
        %905 = vmatprep.subr.mxu0 0.0
        %906 = vmatpush2.msra.mxu0 0.0
        %907 = vmatprep.subr.mxu0 0.0
        %908 = vmatpush2.msra.mxu0 0.0
        %909 = vmatprep.mubr.f32.mxu0 0.0
        %910 = vmatmul.mubr.f32.gmra.mxu0 %v827
        %v911 = vpop.f32.mrf.mxu0
        %v912 = vadd.f32 1e-06, %v911
        %v913 = vpop.f32.mrf.mxu0
        %914 = vmatprep.mubr.f32.mxu0 0.0
        %915 = vmatmul.mubr.f32.gmra.mxu0 %v828
        %v916 = vpop.f32.mrf.mxu0
        %v917 = vadd.f32 1e-06, %v916
        %v918 = vpop.f32.mrf.mxu0
        %919 = vdwg.mxu0
        %v920 = vrcp.pop %v912
        %v921 = vmul.f32 %v812, %v920
        %v922 = vrcp.pop %v917
        %v923 = vmul.f32 %v817, %v922
        %924 = vst [vmem:[%s373] sm:$0xff] %v921
        %925 = vst [vmem:[%s373 + $0x8] sm:$0xff] %v923
        %s926 = sand.u32 %s201, 1
        %s927 = scalar_lea.sflag [#allocation6], %s926
        %s928 = sand.u32 %s201, 1
        %s929 = smul.addr %s928, 16
        %s930 = scalar_lea.vmem [#allocation9], %s929
        // Predicated region
        $region57: #{tpu_custom_call.1} parent=43 // pred_check
          %p931 = pneg %p211
        $region58: #{tpu_custom_call.1} parent=43 // pred_check_branch
          %933 = sbr.rel (%p931) target = $region60
        $region59: #{tpu_custom_call.1} parent=43 // pred_region
          %s934 = smul.u32 2, %s29
          %s936 = ssub.s32 256, 256
          %937 = vsyncadd %s927, %s936
          %s938 = smul.addr %s28, 2
          %s939 = sadd.s32 %s934, %s938
          %s940 = smul.addr %s939, 128
          %s941 = scalar_lea.hbm %s6, %s940
          %s942 = sshll.u32 %s930, 4
          %s943 = int_to_ptr.vmem [resolvable:$true] %s942
          %948 = dma.vmem_to_hbm [thread:$0]  %s943, 256, %s941, %s927, 128, 128, 8
        $region60: #{tpu_custom_call.1} parent=43 // pred_fallthru
          _
      $region44: #{tpu_custom_call.1} parent=5 // pred_fallthru
        _
      %p949 = scmp.le.s32.totalorder 2, %s19
      // Predicated region
      $region61: #{tpu_custom_call.1} parent=5 // pred_check
        %p950 = pneg %p949
      $region62: #{tpu_custom_call.1} parent=5 // pred_check_branch
        %952 = sbr.rel (%p950) target = $region64
      $region63: #{tpu_custom_call.1} parent=5 // pred_region
        %s953 = ssub.s32 %s19, 2
        // Predicated region
        $region65: #{tpu_custom_call.1} parent=63 // pred_check
          %p954 = pneg %p217
        $region66: #{tpu_custom_call.1} parent=63 // pred_check_branch
          %956 = sbr.rel (%p954) target = $region68
        $region67: #{tpu_custom_call.1} parent=63 // pred_region
          %s957 = sand.u32 %s202, 1
          %s958 = scalar_lea.sflag [#allocation6], %s957
          %s959 = sand.u32 %s202, 1
          %s960 = smul.addr %s959, 16
          %s961 = scalar_lea.vmem [#allocation9], %s960
          %962 = dma.done %s958, 256
        $region68: #{tpu_custom_call.1} parent=63 // pred_fallthru
          _
      $region64: #{tpu_custom_call.1} parent=5 // pred_fallthru
        _
    $region6: #{tpu_custom_call.1} parent=1 // loop_footer
      %s23 = sadd.s32 1, %s19
    $region7: #{tpu_custom_call.1} parent=1 // loop_footer_branch
      %18 = sbr.rel target = $region3
    $region8: #{tpu_custom_call.1} parent=1 // loop_exit
      _
    %963 = vsyncpa [#allocation5], 1
    %s964 = scalar_lea.sflag [#allocation5], 1
    %965 = vsyncpa %s964, 1
    %966 = vsyncpa [#allocation8], 1
    %967 = vsyncpa [#allocation6], 1
    %s968 = scalar_lea.sflag [#allocation6], 1
    %969 = vsyncpa %s968, 1

</llo_original>
